<compile_context>
chip_gen: v7x
topology: tpu7x:2x2x1
jax: 0.10.0
libtpu: 0.0.40
codegen_flags: <defaults>
</compile_context>

<pallas_src>
import functools

import jax
import jax.numpy as jnp
from jax import lax
from jax.experimental import pallas as pl
from jax.experimental.pallas import tpu as pltpu


# ----------------------------------------------------------------------------
# Tile-size helpers
# ----------------------------------------------------------------------------
def _pick_tile(dim, target, align):
    """Largest tile <= target that is a multiple of `align` and divides `dim`.
    Falls back to the full dim (block == array extent is always legal)."""
    if dim <= target:
        return dim
    t = (target // align) * align
    while t >= align:
        if dim % t == 0:
            return t
        t -= align
    return dim


def _pick_query_tile(n, h, m, budget_bytes=4 << 20):
    """Largest multiple-of-8 divisor of n whose f32 (h, tq, m) attention-weights
    block stays under `budget_bytes` (keeps double-buffered output tiles modest,
    including on v7x's 64 MiB VMEM)."""
    if n <= 8:
        return n
    best = None
    t = 8
    while t <= n:
        if n % t == 0 and h * t * m * 4 <= budget_bytes:
            best = t
        t += 8
    if best is not None:
        return best
    return 8 if n % 8 == 0 else n


# ----------------------------------------------------------------------------
# Tiled linear kernel:  out = x @ W^T + b      (PyTorch nn.Linear semantics)
#   x : (M, K)   W : (N, K)   b : (1, N)   out : (M, N)
# grid = (M/tm, N/tn, K/tk); K is the reduction axis ("arbitrary").
# ----------------------------------------------------------------------------
def _linear_kernel(x_ref, w_ref, b_ref, o_ref, acc_ref):
    @pl.when(pl.program_id(2) == 0)
    def _init():
        acc_ref[...] = jnp.zeros_like(acc_ref)

    # Contract K of x against K of w: consumes W in its stored (N, K) layout,
    # no in-kernel transpose.
    acc_ref[...] += lax.dot_general(
        x_ref[...], w_ref[...],
        dimension_numbers=(((1,), (1,)), ((), ())),
        preferred_element_type=jnp.float32)

    @pl.when(pl.program_id(2) == pl.num_programs(2) - 1)
    def _finalize():
        o_ref[...] = (acc_ref[...]
                      + b_ref[...].astype(jnp.float32)).astype(o_ref.dtype)


def pallas_linear(x, w, b, *, tm_target=256, tn_target=256, tk_target=512):
    m, k = x.shape
    n = w.shape[0]
    tm = _pick_tile(m, tm_target, 8)
    tn = _pick_tile(n, tn_target, 128)
    tk = _pick_tile(k, tk_target, 128)
    grid = (m // tm, n // tn, k // tk)
    return pl.pallas_call(
        _linear_kernel,
        out_shape=jax.ShapeDtypeStruct((m, n), x.dtype),
        grid=grid,
        in_specs=[
            pl.BlockSpec((tm, tk), lambda i, j, kk: (i, kk)),
            pl.BlockSpec((tn, tk), lambda i, j, kk: (j, kk)),
            pl.BlockSpec((1, tn), lambda i, j, kk: (0, j)),
        ],
        out_specs=pl.BlockSpec((tm, tn), lambda i, j, kk: (i, j)),
        scratch_shapes=[pltpu.VMEM((tm, tn), jnp.float32)],
        compiler_params=pltpu.CompilerParams(
            dimension_semantics=("parallel", "parallel", "arbitrary")),
    )(x, w, b.reshape(1, n))


# ----------------------------------------------------------------------------
# Attention kernel: one (batch, query-tile) per grid step, all heads folded in.
#   q  : (1, tq, H, Dh)        -- natural layout from the Q projection
#   kv : (1, M, 2, H, Dh)      -- natural layout from the fused KV projection
#   o  : (1, H, tq, Dh)
#   a  : (1, H, tq, M)         -- lane-dense (M last) attention weights
# ----------------------------------------------------------------------------
def _attention_kernel(q_ref, kv_ref, o_ref, a_ref, *, scale, num_heads):
    for h in range(num_heads):  # static unroll over heads (compile-time constant)
        qh = q_ref[0, :, h, :].astype(jnp.float32) * scale   # (tq, Dh)
        kh = kv_ref[0, :, 0, h, :].astype(jnp.float32)        # (M, Dh)
        vh = kv_ref[0, :, 1, h, :]                            # (M, Dh)

        # scaled q @ k^T, contracting Dh of both operands (k stays in (M, Dh)).
        s = lax.dot_general(
            qh, kh, dimension_numbers=(((1,), (1,)), ((), ())),
            preferred_element_type=jnp.float32)               # (tq, M)

        s_max = jnp.max(s, axis=-1, keepdims=True)
        p = jnp.exp(s - s_max)
        denom = jnp.sum(p, axis=-1, keepdims=True)
        # approx=False: attention weights are a module output that must match
        # the reference bit-closely.  (pl.reciprocal(..., approx=True) is a
        # free EUP op if ~1e-3 deviation is acceptable.)
        attn = p * pl.reciprocal(denom, approx=False)         # (tq, M)

        a_ref[0, h] = attn.astype(a_ref.dtype)
        o_ref[0, h] = jnp.dot(attn.astype(vh.dtype), vh,
                              preferred_element_type=jnp.float32
                              ).astype(o_ref.dtype)


def pallas_attention(q, kv, scale):
    # q:  (B, N, H, Dh)   kv: (B, M, 2, H, Dh)
    B, N, H, Dh = q.shape
    M = kv.shape[1]
    tq = _pick_query_tile(N, H, M)
    kernel = functools.partial(_attention_kernel, scale=scale, num_heads=H)
    out_h, attn_h = pl.pallas_call(
        kernel,
        out_shape=(
            jax.ShapeDtypeStruct((B, H, N, Dh), q.dtype),     # per-head output
            jax.ShapeDtypeStruct((B, H, N, M), jnp.float32),  # attention weights
        ),
        grid=(B, N // tq),
        in_specs=[
            pl.BlockSpec((1, tq, H, Dh), lambda b, qi: (b, qi, 0, 0)),
            # KV block index is constant across query tiles -> fetched once per batch.
            pl.BlockSpec((1, M, 2, H, Dh), lambda b, qi: (b, 0, 0, 0, 0)),
        ],
        out_specs=(
            pl.BlockSpec((1, H, tq, Dh), lambda b, qi: (b, 0, qi, 0)),
            pl.BlockSpec((1, H, tq, M), lambda b, qi: (b, 0, qi, 0)),
        ),
        compiler_params=pltpu.CompilerParams(
            dimension_semantics=("parallel", "parallel")),
    )(q, kv)
    return out_h, attn_h


# ----------------------------------------------------------------------------
# Full MultiHeadAttention forward
# ----------------------------------------------------------------------------
def multi_head_attention(x, params, num_heads, y=None):
    y = x if y is None else y
    b, n, c = x.shape
    _, m, d_ref = y.shape
    head_dim = c // num_heads
    scale = head_dim ** (-0.5)

    # to_queries / to_keys_values (tiled Pallas matmuls); outputs are consumed
    # by the attention kernel in their natural layouts -> no q/k/v transposes
    # and no keys/values slicing passes over HBM.
    q = pallas_linear(x.reshape(b * n, c), params["wq"], params["bq"])
    q = q.reshape(b, n, num_heads, head_dim)                  # (B, N, H, Dh)
    kv = pallas_linear(y.reshape(b * m, d_ref), params["wkv"], params["bkv"])
    kv = kv.reshape(b, m, 2, num_heads, head_dim)             # (B, M, 2, H, Dh)

    out_h, attn_h = pallas_attention(q, kv, scale)            # (B,H,N,Dh), (B,H,N,M)

    # Back to PyTorch conventions (layout glue only).
    out = out_h.transpose(0, 2, 1, 3).reshape(b, n, c)        # (B, N, C)
    attention = attn_h.transpose(0, 2, 3, 1)                  # (B, N, M, H)

    # final projection (tiled Pallas matmul)
    out = pallas_linear(out.reshape(b * n, c), params["wp"], params["bp"])
    out = out.reshape(b, n, c)
    return out, attention


# ----------------------------------------------------------------------------
# Pure-JAX reference (mirrors the PyTorch forward) for a correctness check
# ----------------------------------------------------------------------------
def reference_mha(x, params, num_heads, y=None):
    y = x if y is None else y
    b, n, c = x.shape
    _, m, d_ref = y.shape
    head_dim = c // num_heads
    scale = head_dim ** (-0.5)
    q = (x @ params["wq"].T + params["bq"]).reshape(b, n, num_heads, head_dim)
    kv = (y @ params["wkv"].T + params["bkv"]).reshape(b, m, 2, num_heads, head_dim)
    keys, values = kv[:, :, 0], kv[:, :, 1]
    attn = jnp.einsum("bnhd,bmhd->bnmh", q, keys) * scale
    attn = jax.nn.softmax(attn, axis=2)
    out = jnp.einsum("bnmh,bmhd->bnhd", attn, values).reshape(b, n, c)
    out = out @ params["wp"].T + params["bp"]
    return out, attn


if __name__ == "__main__":
    # Small shapes consistent with the module: dim_self = 32, 4 heads (Dh = 8).
    B, N, C = 2, 8, 32
    NUM_HEADS = 4
    DIM_REF = C
    M_CROSS = 16

    key = jax.random.PRNGKey(0)
    kx, ky, kq, kbq, kkv, kbkv, kp, kbp = jax.random.split(key, 8)

    x = jax.random.normal(kx, (B, N, C), dtype=jnp.float32)
    y_cross = jax.random.normal(ky, (B, M_CROSS, DIM_REF), dtype=jnp.float32)

    params = {
        "wq":  jax.random.normal(kq,  (C, C), dtype=jnp.float32) * 0.1,
        "bq":  jax.random.normal(kbq, (C,),   dtype=jnp.float32) * 0.1,
        "wkv": jax.random.normal(kkv, (2 * C, DIM_REF), dtype=jnp.float32) * 0.1,
        "bkv": jax.random.normal(kbkv, (2 * C,), dtype=jnp.float32) * 0.1,
        "wp":  jax.random.normal(kp,  (C, C), dtype=jnp.float32) * 0.1,
        "bp":  jax.random.normal(kbp, (C,),   dtype=jnp.float32) * 0.1,
    }

    # ---- self-attention (y = x) ----
    out, attention = multi_head_attention(x, params, NUM_HEADS)
    out = jax.block_until_ready(out)
    attention = jax.block_until_ready(attention)

    out_ref, attn_ref = reference_mha(x, params, NUM_HEADS)
    assert out.shape == (B, N, C)
    assert attention.shape == (B, N, N, NUM_HEADS)
    assert jnp.allclose(out, out_ref, atol=1e-4, rtol=1e-4)
    assert jnp.allclose(attention, attn_ref, atol=1e-5, rtol=1e-4)

    # ---- cross-attention (y != x, m != n) ----
    out_c, attn_c = multi_head_attention(x, params, NUM_HEADS, y=y_cross)
    out_c = jax.block_until_ready(out_c)
    attn_c = jax.block_until_ready(attn_c)

    out_cr, attn_cr = reference_mha(x, params, NUM_HEADS, y=y_cross)
    assert out_c.shape == (B, N, C)
    assert attn_c.shape == (B, N, M_CROSS, NUM_HEADS)
    assert jnp.allclose(out_c, out_cr, atol=1e-4, rtol=1e-4)
    assert jnp.allclose(attn_c, attn_cr, atol=1e-5, rtol=1e-4)

    print("KERNEL_OK")
</pallas_src>

<mosaic_0001>
module attributes {stable_mosaic.version = 11 : i64} {
  func.func @_linear_kernel(%arg0: i32, %arg1: i32, %arg2: i32, %arg3: memref<16x32xf32, #tpu.memory_space<vmem>>, %arg4: memref<32x32xf32, #tpu.memory_space<vmem>>, %arg5: memref<1x32xf32, #tpu.memory_space<vmem>>, %arg6: memref<16x32xf32, #tpu.memory_space<vmem>>, %arg7: memref<16x32xf32, #tpu.memory_space<vmem>>) attributes {dimension_semantics = [#tpu.dimension_semantics<parallel>, #tpu.dimension_semantics<parallel>, #tpu.dimension_semantics<arbitrary>], iteration_bounds = array<i64: 1, 1, 1>, scalar_prefetch = 0 : i64, scratch_operands = 1 : i64, tpu.core_type = #tpu.core_type<tc>, window_params = [{transform_indices = @transform_0, window_bounds = array<i64: 16, 32>}, {transform_indices = @transform_1, window_bounds = array<i64: 32, 32>}, {transform_indices = @transform_2, window_bounds = array<i64: 1, 32>}, {transform_indices = @transform_3, window_bounds = array<i64: 16, 32>}]} {
    %c0_i32 = arith.constant 0 : i32
    %0 = arith.cmpi eq, %arg2, %c0_i32 : i32
    %1 = arith.extui %0 : i1 to i32
    %c0_i32_0 = arith.constant 0 : i32
    %2 = arith.cmpi ne, %1, %c0_i32_0 : i32
    scf.if %2 {
      %cst_10 = arith.constant 0.000000e+00 : f32
      %12 = vector.broadcast %cst_10 : f32 to vector<16x32xf32>
      %c0_11 = arith.constant 0 : index
      %c0_12 = arith.constant 0 : index
      %13 = vector.load %arg7[%c0_11, %c0_12] : memref<16x32xf32, #tpu.memory_space<vmem>>, vector<16x32xf32>
      tpu.vector_store %arg7[%c0_11, %c0_12], %12 {strides = array<i32>} : memref<16x32xf32, #tpu.memory_space<vmem>>, vector<16x32xf32>,
    } else {
    }
    %c0 = arith.constant 0 : index
    %c0_1 = arith.constant 0 : index
    %3 = vector.load %arg7[%c0, %c0_1] : memref<16x32xf32, #tpu.memory_space<vmem>>, vector<16x32xf32>
    %c0_2 = arith.constant 0 : index
    %c0_3 = arith.constant 0 : index
    %4 = vector.load %arg3[%c0_2, %c0_3] : memref<16x32xf32, #tpu.memory_space<vmem>>, vector<16x32xf32>
    %c0_4 = arith.constant 0 : index
    %c0_5 = arith.constant 0 : index
    %5 = vector.load %arg4[%c0_4, %c0_5] : memref<32x32xf32, #tpu.memory_space<vmem>>, vector<32x32xf32>
    %cst = arith.constant dense<0.000000e+00> : vector<16x32xf32>
    %6 = tpu.matmul %4, %5, %cst {dimension_numbers = #tpu.dot_dimension_numbers<[1], [1], [0], [0], [0, 0, 1, 0], [], []>} : vector<16x32xf32>, vector<32x32xf32>, vector<16x32xf32> -> vector<16x32xf32>
    %7 = arith.addf %3, %6 : vector<16x32xf32>
    %c0_6 = arith.constant 0 : index
    %c0_7 = arith.constant 0 : index
    %8 = vector.load %arg7[%c0_6, %c0_7] : memref<16x32xf32, #tpu.memory_space<vmem>>, vector<16x32xf32>
    tpu.vector_store %arg7[%c0_6, %c0_7], %7 {strides = array<i32>} : memref<16x32xf32, #tpu.memory_space<vmem>>, vector<16x32xf32>,
    %c0_i32_8 = arith.constant 0 : i32
    %9 = arith.cmpi eq, %arg2, %c0_i32_8 : i32
    %10 = arith.extui %9 : i1 to i32
    %c0_i32_9 = arith.constant 0 : i32
    %11 = arith.cmpi ne, %10, %c0_i32_9 : i32
    scf.if %11 {
      %c0_10 = arith.constant 0 : index
      %c0_11 = arith.constant 0 : index
      %12 = vector.load %arg7[%c0_10, %c0_11] : memref<16x32xf32, #tpu.memory_space<vmem>>, vector<16x32xf32>
      %c0_12 = arith.constant 0 : index
      %c0_13 = arith.constant 0 : index
      %13 = vector.load %arg5[%c0_12, %c0_13] : memref<1x32xf32, #tpu.memory_space<vmem>>, vector<1x32xf32>
      %14 = vector.broadcast %13 : vector<1x32xf32> to vector<16x32xf32>
      %15 = arith.addf %12, %14 : vector<16x32xf32>
      %c0_14 = arith.constant 0 : index
      %c0_15 = arith.constant 0 : index
      %16 = vector.load %arg6[%c0_14, %c0_15] : memref<16x32xf32, #tpu.memory_space<vmem>>, vector<16x32xf32>
      tpu.vector_store %arg6[%c0_14, %c0_15], %15 {strides = array<i32>} : memref<16x32xf32, #tpu.memory_space<vmem>>, vector<16x32xf32>,
    } else {
    }
    return
  }
  func.func @transform_0(%arg0: i32, %arg1: i32, %arg2: i32) -> (i32, i32) {
    %c0_i32 = arith.constant 0 : i32
    return %arg0, %arg2 : i32, i32
  }
  func.func @transform_1(%arg0: i32, %arg1: i32, %arg2: i32) -> (i32, i32) {
    %c0_i32 = arith.constant 0 : i32
    return %arg1, %arg2 : i32, i32
  }
  func.func @transform_2(%arg0: i32, %arg1: i32, %arg2: i32) -> (i32, i32) {
    %c0_i32 = arith.constant 0 : i32
    %c0_i32_0 = arith.constant 0 : i32
    return %c0_i32, %arg1 : i32, i32
  }
  func.func @transform_3(%arg0: i32, %arg1: i32, %arg2: i32) -> (i32, i32) {
    %c0_i32 = arith.constant 0 : i32
    return %arg0, %arg1 : i32, i32
  }
}

</mosaic_0001>

<llo_original>
// kernel: tpu_custom_call.1
$region0: #{tpu_custom_call.1}
  #allocation0 [shape = 'u32[]', space=smem, size = 0x4, offset = 0x4, fixed_abs, tag = 'smem constant byte address 0x4 - core index']
  #allocation1 [shape = 'u32[144,128]{1,0:T(1,128)}', space=vmem, size = 0x12000, scoped, tag = 'internal scratch']
  #allocation2 [shape = 'f32[16,32]{1,0:T(8,128)}', space=vmem, size = 0x2000, scoped, tag = 'scratch operand']
  %s0 = inlined_call_operand.hbm [shape: f32[16,32], index: 0, kind: input, shape index: {}]
  %s1 = inlined_call_operand.hbm [shape: f32[32,32], index: 1, kind: input, shape index: {}]
  %s2 = inlined_call_operand.vmem [shape: f32[1,32], index: 2, kind: input, shape index: {}]
  %s3 = inlined_call_operand.hbm [shape: f32[16,32], index: 3, kind: output, shape index: {}]
  %s4 = sld [smem:[#allocation0]]
  $region38: #{tpu_custom_call.1} parent=0
    _
  %s6 = ssub.s32 1, %s4
  %s7 = scalar_select 0, %s6, %s4
  $region1: #{tpu_custom_call.1} parent=0
    #allocation3 [shape = 'u8[8192]{0}', space=vmem, size = 0x2000, scoped, tag = 'input window, operand 0, single buffered']
    #allocation4 [shape = 's32[1]{0}', space=sflag, size = 0x4, scoped, tag = 'scoped memory for tpu_custom_call.1']
    #allocation5 [shape = 's32[1]{0}', space=sflag, size = 0x4, scoped, tag = 'scoped memory for tpu_custom_call.1']
    #allocation6 [shape = 'u8[16384]{0}', space=vmem, size = 0x4000, scoped, tag = 'input window, operand 1, single buffered']
    #allocation7 [shape = 's32[1]{0}', space=sflag, size = 0x4, scoped, tag = 'scoped memory for tpu_custom_call.1']
    #allocation8 [shape = 'u8[8192]{0}', space=vmem, size = 0x2000, scoped, tag = 'output window, operand 0, single buffered']
    %8 = vsyncpa [#allocation4], 0
    %9 = vsyncpa [#allocation7], 0
    %10 = vsyncpa [#allocation5], 0
    // Predicated region
    $region2: #{tpu_custom_call.1} parent=1 // pred_check
      _
    $region3: #{tpu_custom_call.1} parent=1 // pred_check_branch
      %12 = sbr.rel (0) target = $region5
    $region4: #{tpu_custom_call.1} parent=1 // pred_region
      %s14 = ssub.s32 256, 256
      %15 = vsyncadd [#allocation4], %s14
      %s16 = sshll.u32 [#allocation3], 4
      %s17 = int_to_ptr.vmem [resolvable:$true] %s16
      %22 = dma.hbm_to_vmem [thread:$0]  %s0, 256, %s17, [#allocation4], 128, 128, 8
    $region5: #{tpu_custom_call.1} parent=1 // pred_fallthru
      _
    // Predicated region
    $region6: #{tpu_custom_call.1} parent=1 // pred_check
      _
    $region7: #{tpu_custom_call.1} parent=1 // pred_check_branch
      %24 = sbr.rel (0) target = $region9
    $region8: #{tpu_custom_call.1} parent=1 // pred_region
      %s26 = ssub.s32 512, 512
      %27 = vsyncadd [#allocation7], %s26
      %s28 = sshll.u32 [#allocation6], 4
      %s29 = int_to_ptr.vmem [resolvable:$true] %s28
      %34 = dma.hbm_to_vmem [thread:$0]  %s1, 512, %s29, [#allocation7], 128, 128, 8
    $region9: #{tpu_custom_call.1} parent=1 // pred_fallthru
      _
    // Predicated region
    $region10: #{tpu_custom_call.1} parent=1 // pred_check
      _
    $region11: #{tpu_custom_call.1} parent=1 // pred_check_branch
      %36 = sbr.rel (0) target = $region13
    $region12: #{tpu_custom_call.1} parent=1 // pred_region
      _
    $region13: #{tpu_custom_call.1} parent=1 // pred_fallthru
      _
    // Predicated region
    $region14: #{tpu_custom_call.1} parent=1 // pred_check
      _
    $region15: #{tpu_custom_call.1} parent=1 // pred_check_branch
      %38 = sbr.rel (0) target = $region17
    $region16: #{tpu_custom_call.1} parent=1 // pred_region
      %39 = dma.done [#allocation4], 256
    $region17: #{tpu_custom_call.1} parent=1 // pred_fallthru
      _
    // Predicated region
    $region18: #{tpu_custom_call.1} parent=1 // pred_check
      _
    $region19: #{tpu_custom_call.1} parent=1 // pred_check_branch
      %41 = sbr.rel (0) target = $region21
    $region20: #{tpu_custom_call.1} parent=1 // pred_region
      %42 = dma.done [#allocation7], 512
    $region21: #{tpu_custom_call.1} parent=1 // pred_fallthru
      _
    %p43 = scmp.eq.s32.totalorder 0, 0
    // Predicated region
    $region22: #{tpu_custom_call.1} parent=1 // pred_check
      %p44 = pneg %p43
    $region23: #{tpu_custom_call.1} parent=1 // pred_check_branch
      %46 = sbr.rel (%p44) target = $region25
    $region24: #{tpu_custom_call.1} parent=1 // pred_region
      %vm47 = vcmask 261120
      %48 = vst.msk [vmem:[#allocation2] sm:$0xff] %vm47, 0.0
      %49 = vst.msk [vmem:[#allocation2 + $0x8] sm:$0xff] %vm47, 0.0
    $region25: #{tpu_custom_call.1} parent=1 // pred_fallthru
      _
    %v50 = vld [vmem:[#allocation2] sm:$0xff]
    %v51 = vld [vmem:[#allocation2 + $0x8] sm:$0xff]
    %v52 = vld [vmem:[#allocation3] sm:$0xff]
    %v53 = vld [vmem:[#allocation3 + $0x8] sm:$0xff]
    %v54 = vld [vmem:[#allocation6] sm:$0xff]
    %v55 = vld [vmem:[#allocation6 + $0x8] sm:$0xff]
    %v56 = vld [vmem:[#allocation6 + $0x10] sm:$0xff]
    %v57 = vld [vmem:[#allocation6 + $0x18] sm:$0xff]
    %vm58 = vcmask 261120
    %v60 = vsel %vm58, %v52, 0
    %v63 = vsel %vm58, %v53, 0
    %v66 = vsel %vm58, %v54, 0
    %v69 = vsel %vm58, %v55, 0
    %v72 = vsel %vm58, %v56, 0
    %v75 = vsel %vm58, %v57, 0
    %77 = vmatprep.subr.mxu0 0.0
    %78 = vmatpush1.xpose.msra.mxu0 %v66
    %79 = vmatprep.subr.mxu0 0.0
    %80 = vmatpush1.xpose.msra.mxu0 %v69
    %81 = vmatprep.subr.mxu0 0.0
    %82 = vmatpush1.xpose.msra.mxu0 %v72
    %83 = vmatprep.subr.mxu0 0.0
    %84 = vmatpush1.xpose.msra.mxu0 %v75
    %85 = vmatprep.subr.mxu0 0.0
    %86 = vmatpush1.xpose.msra.mxu0 0.0
    %87 = vmatprep.subr.mxu0 0.0
    %88 = vmatpush1.xpose.msra.mxu0 0.0
    %89 = vmatprep.subr.mxu0 0.0
    %90 = vmatpush1.xpose.msra.mxu0 0.0
    %91 = vmatprep.subr.mxu0 0.0
    %92 = vmatpush1.xpose.msra.mxu0 0.0
    %93 = vmatprep.subr.mxu0 0.0
    %94 = vmatpush1.xpose.msra.mxu0 0.0
    %95 = vmatprep.subr.mxu0 0.0
    %96 = vmatpush1.xpose.msra.mxu0 0.0
    %97 = vmatprep.subr.mxu0 0.0
    %98 = vmatpush1.xpose.msra.mxu0 0.0
    %99 = vmatprep.subr.mxu0 0.0
    %100 = vmatpush1.xpose.msra.mxu0 0.0
    %101 = vmatprep.subr.mxu0 0.0
    %102 = vmatpush1.xpose.msra.mxu0 0.0
    %103 = vmatprep.subr.mxu0 0.0
    %104 = vmatpush1.xpose.msra.mxu0 0.0
    %105 = vmatprep.subr.mxu0 0.0
    %106 = vmatpush1.xpose.msra.mxu0 0.0
    %107 = vmatprep.subr.mxu0 0.0
    %108 = vmatpush1.xpose.msra.mxu0 0.0
    %109 = vmatprep.subr.mxu0 0.0
    %110 = vmatpush1.xpose.msra.mxu0 0.0
    %111 = vmatprep.subr.mxu0 0.0
    %112 = vmatpush1.xpose.msra.mxu0 0.0
    %113 = vmatprep.subr.mxu0 0.0
    %114 = vmatpush1.xpose.msra.mxu0 0.0
    %115 = vmatprep.subr.mxu0 0.0
    %116 = vmatpush1.xpose.msra.mxu0 0.0
    %117 = vmatprep.subr.mxu0 0.0
    %118 = vmatpush1.xpose.msra.mxu0 0.0
    %119 = vmatprep.subr.mxu0 0.0
    %120 = vmatpush1.xpose.msra.mxu0 0.0
    %121 = vmatprep.subr.mxu0 0.0
    %122 = vmatpush1.xpose.msra.mxu0 0.0
    %123 = vmatprep.subr.mxu0 0.0
    %124 = vmatpush1.xpose.msra.mxu0 0.0
    %125 = vmatprep.subr.mxu0 0.0
    %126 = vmatpush1.xpose.msra.mxu0 0.0
    %127 = vmatprep.subr.mxu0 0.0
    %128 = vmatpush1.xpose.msra.mxu0 0.0
    %129 = vmatprep.subr.mxu0 0.0
    %130 = vmatpush1.xpose.msra.mxu0 0.0
    %131 = vmatprep.subr.mxu0 0.0
    %132 = vmatpush1.xpose.msra.mxu0 0.0
    %133 = vmatprep.subr.mxu0 0.0
    %134 = vmatpush1.xpose.msra.mxu0 0.0
    %135 = vmatprep.subr.mxu0 0.0
    %136 = vmatpush1.xpose.msra.mxu0 0.0
    %137 = vmatprep.subr.mxu0 0.0
    %138 = vmatpush1.xpose.msra.mxu0 0.0
    %139 = vmatprep.subr.mxu0 0.0
    %140 = vmatpush1.xpose.msra.mxu0 0.0
    %141 = vmatprep.mubr.f32.mxu0 0.0
    %142 = vmatmul.mubr.f32.gmra.mrb[0].mxu0 %v60
    %v143 = vpop.f32.mrb[0].mxu0
    %v144 = vadd.f32 0.0, %v143
    %v145 = vpop.f32.mrb[0].mxu0
    %146 = vmatprep.mubr.f32.mxu0 0.0
    %147 = vmatmul.mubr.f32.gmra.mrb[0].mxu0 %v63
    %v148 = vpop.f32.mrb[0].mxu0
    %v149 = vadd.f32 0.0, %v148
    %v150 = vpop.f32.mrb[0].mxu0
    %151 = vdwg.mxu0
    %v152 = vadd.f32 %v50, %v144
    %v153 = vadd.f32 %v51, %v149
    %154 = vst.msk [vmem:[#allocation2] sm:$0xff] %vm58, %v152
    %155 = vst.msk [vmem:[#allocation2 + $0x8] sm:$0xff] %vm58, %v153
    // Predicated region
    $region26: #{tpu_custom_call.1} parent=1 // pred_check
      %p156 = pneg %p43
    $region27: #{tpu_custom_call.1} parent=1 // pred_check_branch
      %158 = sbr.rel (%p156) target = $region29
    $region28: #{tpu_custom_call.1} parent=1 // pred_region
      %v159 = vld [vmem:[#allocation2] sm:$0xff]
      %v160 = vld [vmem:[#allocation2 + $0x8] sm:$0xff]
      %v161 = vld [vmem:[%s2] sm:$0x1]
      %v163 = vlaneseq
      %v164 = vshrl.u32 %v163, 7
      %v165 = vsub.s32 0, %v164
      %v166 = vrot.slane %v161, %v165
      %v168 = vadd.f32 %v159, %v166
      %v169 = vadd.f32 %v160, %v166
      %170 = vst.msk [vmem:[#allocation8] sm:$0xff] %vm58, %v168
      %171 = vst.msk [vmem:[#allocation8 + $0x8] sm:$0xff] %vm58, %v169
    $region29: #{tpu_custom_call.1} parent=1 // pred_fallthru
      _
    // Predicated region
    $region30: #{tpu_custom_call.1} parent=1 // pred_check
      _
    $region31: #{tpu_custom_call.1} parent=1 // pred_check_branch
      %173 = sbr.rel (0) target = $region33
    $region32: #{tpu_custom_call.1} parent=1 // pred_region
      %s175 = ssub.s32 256, 256
      %176 = vsyncadd [#allocation5], %s175
      %s177 = sshll.u32 [#allocation8], 4
      %s178 = int_to_ptr.vmem [resolvable:$true] %s177
      %183 = dma.vmem_to_hbm [thread:$0]  %s178, 256, %s3, [#allocation5], 128, 128, 8
    $region33: #{tpu_custom_call.1} parent=1 // pred_fallthru
      _
    // Predicated region
    $region34: #{tpu_custom_call.1} parent=1 // pred_check
      _
    $region35: #{tpu_custom_call.1} parent=1 // pred_check_branch
      %185 = sbr.rel (0) target = $region37
    $region36: #{tpu_custom_call.1} parent=1 // pred_region
      %186 = dma.done [#allocation5], 256
    $region37: #{tpu_custom_call.1} parent=1 // pred_fallthru
      _
    %187 = vsyncpa [#allocation4], 1
    %188 = vsyncpa [#allocation7], 1
    %189 = vsyncpa [#allocation5], 1

</llo_original>
